<compile_context>
chip_gen: v7x
topology: tpu7x:2x2x1
jax: 0.10.0
libtpu: 0.0.40
codegen_flags: <defaults>
</compile_context>

<pallas_src>
import math

import jax
import jax.numpy as jnp
from jax.experimental import pallas as pl
from jax.experimental.pallas import tpu as pltpu

BN_EPS = 1e-5
LEAKY_SLOPE = 0.01  # PyTorch nn.LeakyReLU default
LANE = 128


# --------------------------------------------------------------------------- #
# Kernel: one fused block-diagonal MLP chain for all modalities
# --------------------------------------------------------------------------- #
def _build_fused_kernel(n_mod):
    """refs layout:
         x_0..x_{n-1}   : [B, in_i]
         w1_0..w1_{n-1} : [in_i, H_TOT]   (modality i's BN-folded W1 placed in its
                                           own hidden column range, zeros elsewhere)
         b1             : [1, H_TOT]
         w2h            : [H_TOT, n_mod*128]  block-diag (W2 @ [Wmu|Wls|Wmu@Wnet])
         b2h            : [1, n_mod*128]
         out            : [B, n_mod*128]  lane-dense slab (one 128-lane slot/modality)
    """

    def kernel(*refs):
        xs = refs[:n_mod]
        w1s = refs[n_mod:2 * n_mod]
        b1_ref, w2h_ref, b2h_ref, out_ref = refs[2 * n_mod:]

        # Layer 1: per-modality matmuls accumulate into the shared hidden slab.
        # Column ranges are disjoint (block-diagonal), so the sum is exact.
        acc = jnp.dot(xs[0][...], w1s[0][...], preferred_element_type=jnp.float32)
        for i in range(1, n_mod):
            acc = acc + jnp.dot(xs[i][...], w1s[i][...],
                                preferred_element_type=jnp.float32)
        h = acc + b1_ref[...]
        # LeakyReLU (Dropout == identity, eval-mode BatchNorm folded into W1/b1).
        h = jnp.where(h > 0, h, LEAKY_SLOPE * h)
        # Layer 2 + mu/logsigma/logit heads: one block-diagonal matmul.
        out = jnp.dot(h, w2h_ref[...], preferred_element_type=jnp.float32) + b2h_ref[...]
        # Single unmasked, 128-lane-aligned store of every output.
        out_ref[...] = out.astype(out_ref.dtype)

    return kernel


# --------------------------------------------------------------------------- #
# Parameter init (mirrors fresh PyTorch Linear/BatchNorm init)
# --------------------------------------------------------------------------- #
def init_params(key, input_dims, dim):
    """Uniform ~ 1/sqrt(fan_in) like PyTorch Linear; weights stored as [in, out]."""

    def linear(key, fan_in, fan_out):
        kw, kb = jax.random.split(key)
        bound = 1.0 / math.sqrt(fan_in)
        w = jax.random.uniform(kw, (fan_in, fan_out), jnp.float32, -bound, bound)
        b = jax.random.uniform(kb, (1, fan_out), jnp.float32, -bound, bound)
        return w, b

    per_modality = []
    for input_dim in input_dims:
        hidden = int(input_dim * 0.5)
        key, k1, k2, k3, k4 = jax.random.split(key, 5)
        w1, b1 = linear(k1, input_dim, hidden)
        gamma = jnp.ones((1, hidden), jnp.float32)   # BatchNorm1d weight
        beta = jnp.zeros((1, hidden), jnp.float32)   # BatchNorm1d bias
        w2, b2 = linear(k2, hidden, dim)
        wmu, bmu = linear(k3, dim, dim)
        wls, bls = linear(k4, dim, dim)
        per_modality.append((w1, b1, gamma, beta, w2, b2, wmu, bmu, wls, bls))

    key, knet = jax.random.split(key)
    net_params = linear(knet, dim, 1)                # shared logistic head
    return per_modality, net_params


# --------------------------------------------------------------------------- #
# One-time parameter folding (hoisted out of the per-call path)
# --------------------------------------------------------------------------- #
def prepare_fused_params(per_modality_params, net_params, dim):
    wnet, bnet = net_params                          # [dim, 1], [1, 1]
    inv_std = 1.0 / math.sqrt(1.0 + BN_EPS)          # eval: running mean=0, var=1
    # TODO(synk): fold real checkpointed running stats here if they are ever loaded.
    head_w = 2 * dim + 1
    n_mod = len(per_modality_params)

    hiddens = [p[0].shape[1] for p in per_modality_params]
    h_tot = sum(hiddens)
    out_pad = n_mod * LANE

    w1_blocks, b1_chunks, w2h_rows, b2h_chunks = [], [], [], []
    h_off = 0
    for i, (w1, b1, gamma, beta, w2, b2, wmu, bmu, wls, bls) in enumerate(
            per_modality_params):
        hidden = w1.shape[1]
        scale = gamma * inv_std
        w1f = w1 * scale                             # BN folded into W1
        b1f = b1 * scale + beta                      # BN folded into b1
        # Place this modality's hidden units in columns [h_off, h_off+hidden).
        w1_blocks.append(jnp.pad(w1f, ((0, 0), (h_off, h_tot - h_off - hidden))))
        b1_chunks.append(b1f)

        # Fused head [mu | logsigma | logit] with the logistic head folded in.
        w_logit = wmu @ wnet                         # [dim, 1]
        b_logit = bmu @ wnet + bnet                  # [1, 1]
        w_head = jnp.concatenate([wmu, wls, w_logit], axis=1)   # [dim, head_w]
        b_head = jnp.concatenate([bmu, bls, b_logit], axis=1)   # [1, head_w]
        # Fold W2 into the heads:  out = h @ (W2 @ W_head) + (b2 @ W_head + b_head)
        w2h = w2 @ w_head                            # [hidden, head_w]
        b2h = b2 @ w_head + b_head                   # [1, head_w]
        # Give this modality a private 128-lane-aligned output slot.
        w2h = jnp.pad(w2h, ((0, 0), (i * LANE, out_pad - i * LANE - head_w)))
        b2h = jnp.pad(b2h, ((0, 0), (0, LANE - head_w)))
        w2h_rows.append(w2h)
        b2h_chunks.append(b2h)
        h_off += hidden

    w1p = tuple(w1_blocks)                           # n_mod x [in_i, h_tot]
    b1_blk = jnp.concatenate(b1_chunks, axis=1)      # [1, h_tot]
    w2h_blk = jnp.concatenate(w2h_rows, axis=0)      # [h_tot, out_pad]
    b2h_blk = jnp.concatenate(b2h_chunks, axis=1)    # [1, out_pad]
    return w1p, b1_blk, w2h_blk, b2h_blk


# --------------------------------------------------------------------------- #
# Forward builder: folds params once, returns a jitted forward
# --------------------------------------------------------------------------- #
def make_forward(per_modality_params, net_params, dim):
    n_mod = len(per_modality_params)
    w1p, b1_blk, w2h_blk, b2h_blk = prepare_fused_params(
        per_modality_params, net_params, dim)
    out_pad = n_mod * LANE
    kernel = _build_fused_kernel(n_mod)
    vmem = pl.BlockSpec(memory_space=pltpu.MemorySpace.VMEM)

    @jax.jit
    def forward(*xs):
        B = xs[0].shape[0]
        args = list(xs) + list(w1p) + [b1_blk, w2h_blk, b2h_blk]
        slab = pl.pallas_call(
            kernel,
            out_shape=jax.ShapeDtypeStruct((B, out_pad), jnp.float32),
            in_specs=[vmem] * len(args),
            out_specs=vmem,
        )(*args)

        net_logits, logistic_logits = [], []
        for i in range(n_mod):
            off = i * LANE
            mu = slab[:, off:off + dim]
            ls = slab[:, off + dim:off + 2 * dim]
            logit = slab[:, off + 2 * dim:off + 2 * dim + 1]
            z = mu  # eval-mode gaussian_sampler returns mu
            net_logits.append((z, mu, ls))
            logistic_logits.append(logit)
        return net_logits, logistic_logits

    return forward


# --------------------------------------------------------------------------- #
# Pure-JAX reference (unfused) for a correctness sanity check
# --------------------------------------------------------------------------- #
def reference_forward(xs, per_modality_params, net_params):
    wnet, bnet = net_params
    inv_std = 1.0 / math.sqrt(1.0 + BN_EPS)
    net_logits, logistic_logits = [], []
    for x, (w1, b1, gamma, beta, w2, b2, wmu, bmu, wls, bls) in zip(
            xs, per_modality_params):
        h = x @ w1 + b1
        h = h * (gamma * inv_std) + beta
        h = jnp.where(h > 0, h, LEAKY_SLOPE * h)
        y = h @ w2 + b2
        mu = y @ wmu + bmu
        ls = y @ wls + bls
        z = mu
        logit = z @ wnet + bnet
        net_logits.append((z, mu, ls))
        logistic_logits.append(logit)
    return net_logits, logistic_logits


if __name__ == "__main__":
    key = jax.random.PRNGKey(0)

    # Small, module-consistent shapes: 2 modalities, batch=4, dims=(32, 16), dim=8
    input_dims = (32, 16)
    dim = 8
    batch = 4

    key, kx0, kx1, kp = jax.random.split(key, 4)
    x0 = jax.random.normal(kx0, (batch, input_dims[0]), jnp.float32)
    x1 = jax.random.normal(kx1, (batch, input_dims[1]), jnp.float32)
    xs = (x0, x1)

    per_modality_params, net_params = init_params(kp, input_dims, dim)

    forward = make_forward(per_modality_params, net_params, dim)
    net_logits, logistic_logits = forward(*xs)
    jax.block_until_ready((net_logits, logistic_logits))

    # Shape checks.
    assert len(net_logits) == len(input_dims)
    for (z, mu, ls), logit in zip(net_logits, logistic_logits):
        assert z.shape == (batch, dim)
        assert mu.shape == (batch, dim)
        assert ls.shape == (batch, dim)
        assert logit.shape == (batch, 1)

    # Numerical check against the unfused pure-JAX reference.
    # (Tolerances absorb the W2-into-head refactoring / matmul reassociation;
    #  set precision=HIGHEST on the dots if bit-level parity is required.)
    ref_net, ref_logits = reference_forward(xs, per_modality_params, net_params)
    for (z, mu, ls), (rz, rmu, rls), logit, rlogit in zip(
            net_logits, ref_net, logistic_logits, ref_logits):
        assert jnp.allclose(mu, rmu, rtol=1e-2, atol=2e-3)
        assert jnp.allclose(ls, rls, rtol=1e-2, atol=2e-3)
        assert jnp.allclose(z, rz, rtol=1e-2, atol=2e-3)
        assert jnp.allclose(logit, rlogit, rtol=1e-2, atol=2e-3)

    print("KERNEL_OK")
</pallas_src>

<mosaic_0001>
module attributes {stable_mosaic.version = 11 : i64} {
  func.func @kernel(%arg0: memref<4x32xf32, #tpu.memory_space<vmem>>, %arg1: memref<4x16xf32, #tpu.memory_space<vmem>>, %arg2: memref<32x24xf32, #tpu.memory_space<vmem>>, %arg3: memref<16x24xf32, #tpu.memory_space<vmem>>, %arg4: memref<1x24xf32, #tpu.memory_space<vmem>>, %arg5: memref<24x256xf32, #tpu.memory_space<vmem>>, %arg6: memref<1x256xf32, #tpu.memory_space<vmem>>, %arg7: memref<4x256xf32, #tpu.memory_space<vmem>>) attributes {dimension_semantics = [], scalar_prefetch = 0 : i64, scratch_operands = 0 : i64, tpu.core_type = #tpu.core_type<tc>} {
    %c0 = arith.constant 0 : index
    %c0_0 = arith.constant 0 : index
    %0 = vector.load %arg0[%c0, %c0_0] : memref<4x32xf32, #tpu.memory_space<vmem>>, vector<4x32xf32>
    %c0_1 = arith.constant 0 : index
    %c0_2 = arith.constant 0 : index
    %1 = vector.load %arg2[%c0_1, %c0_2] : memref<32x24xf32, #tpu.memory_space<vmem>>, vector<32x24xf32>
    %cst = arith.constant dense<0.000000e+00> : vector<4x24xf32>
    %2 = tpu.matmul %0, %1, %cst {dimension_numbers = #tpu.dot_dimension_numbers<[1], [0], [0], [1], [0, 0, 1, 1], [], []>} : vector<4x32xf32>, vector<32x24xf32>, vector<4x24xf32> -> vector<4x24xf32>
    %c0_3 = arith.constant 0 : index
    %c0_4 = arith.constant 0 : index
    %3 = vector.load %arg1[%c0_3, %c0_4] : memref<4x16xf32, #tpu.memory_space<vmem>>, vector<4x16xf32>
    %c0_5 = arith.constant 0 : index
    %c0_6 = arith.constant 0 : index
    %4 = vector.load %arg3[%c0_5, %c0_6] : memref<16x24xf32, #tpu.memory_space<vmem>>, vector<16x24xf32>
    %cst_7 = arith.constant dense<0.000000e+00> : vector<4x24xf32>
    %5 = tpu.matmul %3, %4, %cst_7 {dimension_numbers = #tpu.dot_dimension_numbers<[1], [0], [0], [1], [0, 0, 1, 1], [], []>} : vector<4x16xf32>, vector<16x24xf32>, vector<4x24xf32> -> vector<4x24xf32>
    %6 = arith.addf %2, %5 : vector<4x24xf32>
    %c0_8 = arith.constant 0 : index
    %c0_9 = arith.constant 0 : index
    %7 = vector.load %arg4[%c0_8, %c0_9] : memref<1x24xf32, #tpu.memory_space<vmem>>, vector<1x24xf32>
    %8 = vector.broadcast %7 : vector<1x24xf32> to vector<4x24xf32>
    %9 = arith.addf %6, %8 : vector<4x24xf32>
    %cst_10 = arith.constant 0.000000e+00 : f32
    %10 = vector.broadcast %cst_10 : f32 to vector<4x24xf32>
    %11 = arith.cmpf ogt, %9, %10 : vector<4x24xf32>
    %cst_11 = arith.constant 0.00999999977 : f32
    %12 = vector.broadcast %cst_11 : f32 to vector<4x24xf32>
    %13 = arith.mulf %12, %9 : vector<4x24xf32>
    %14 = arith.select %11, %9, %13 : vector<4x24xi1>, vector<4x24xf32>
    %c0_12 = arith.constant 0 : index
    %c0_13 = arith.constant 0 : index
    %15 = vector.load %arg5[%c0_12, %c0_13] : memref<24x256xf32, #tpu.memory_space<vmem>>, vector<24x256xf32>
    %cst_14 = arith.constant dense<0.000000e+00> : vector<4x256xf32>
    %16 = tpu.matmul %14, %15, %cst_14 {dimension_numbers = #tpu.dot_dimension_numbers<[1], [0], [0], [1], [0, 0, 1, 1], [], []>} : vector<4x24xf32>, vector<24x256xf32>, vector<4x256xf32> -> vector<4x256xf32>
    %c0_15 = arith.constant 0 : index
    %c0_16 = arith.constant 0 : index
    %17 = vector.load %arg6[%c0_15, %c0_16] : memref<1x256xf32, #tpu.memory_space<vmem>>, vector<1x256xf32>
    %18 = vector.broadcast %17 : vector<1x256xf32> to vector<4x256xf32>
    %19 = arith.addf %16, %18 : vector<4x256xf32>
    %c0_17 = arith.constant 0 : index
    %c0_18 = arith.constant 0 : index
    %20 = vector.load %arg7[%c0_17, %c0_18] : memref<4x256xf32, #tpu.memory_space<vmem>>, vector<4x256xf32>
    tpu.vector_store %arg7[%c0_17, %c0_18], %19 {strides = array<i32>} : memref<4x256xf32, #tpu.memory_space<vmem>>, vector<4x256xf32>,
    return
  }
}

</mosaic_0001>

<llo_original>
// kernel: forward.1
$region0: #{forward.1}
  #allocation0 [shape = 'u32[]', space=smem, size = 0x4, offset = 0x4, fixed_abs, tag = 'smem constant byte address 0x4 - core index']
  #allocation1 [shape = 'u32[144,128]{1,0:T(1,128)}', space=vmem, size = 0x12000, scoped, tag = 'internal scratch']
  %s0 = inlined_call_operand.hbm [shape: f32[4,32], index: 0, kind: input, shape index: {}]
  %s1 = inlined_call_operand.hbm [shape: f32[4,16], index: 1, kind: input, shape index: {}]
  %s2 = inlined_call_operand.hbm [shape: f32[32,24], index: 2, kind: input, shape index: {}]
  %s3 = inlined_call_operand.hbm [shape: f32[16,24], index: 3, kind: input, shape index: {}]
  %s4 = inlined_call_operand.vmem [shape: f32[1,24], index: 4, kind: input, shape index: {}]
  %s5 = inlined_call_operand.hbm [shape: f32[24,256], index: 5, kind: input, shape index: {}]
  %s6 = inlined_call_operand.vmem [shape: f32[1,256], index: 6, kind: input, shape index: {}]
  %s7 = inlined_call_operand.vmem [shape: f32[4,256], index: 7, kind: output, shape index: {}]
  %s8 = sld [smem:[#allocation0]]
  $region58: #{forward.1} parent=0
    _
  %s10 = ssub.s32 1, %s8
  %s11 = scalar_select 0, %s10, %s8
  $region1: #{forward.1} parent=0
    #allocation2 [shape = 'u8[2048]{0}', space=vmem, size = 0x800, scoped, tag = 'input window, operand 0, single buffered']
    #allocation3 [shape = 's32[1]{0}', space=sflag, size = 0x4, scoped, tag = 'scoped memory for forward.1']
    #allocation4 [shape = 'u8[2048]{0}', space=vmem, size = 0x800, scoped, tag = 'input window, operand 1, single buffered']
    #allocation5 [shape = 's32[1]{0}', space=sflag, size = 0x4, scoped, tag = 'scoped memory for forward.1']
    #allocation6 [shape = 'u8[16384]{0}', space=vmem, size = 0x4000, scoped, tag = 'input window, operand 2, single buffered']
    #allocation7 [shape = 'u8[8192]{0}', space=vmem, size = 0x2000, scoped, tag = 'input window, operand 3, single buffered']
    #allocation8 [shape = 's32[1]{0}', space=sflag, size = 0x4, scoped, tag = 'scoped memory for forward.1']
    #allocation9 [shape = 'u8[24576]{0}', space=vmem, size = 0x6000, scoped, tag = 'input window, operand 5, single buffered']
    %12 = vsyncpa [#allocation3], 0
    %13 = vsyncpa [#allocation5], 0
    %14 = vsyncpa [#allocation8], 0
    // Predicated region
    $region2: #{forward.1} parent=1 // pred_check
      _
    $region3: #{forward.1} parent=1 // pred_check_branch
      %16 = sbr.rel (0) target = $region5
    $region4: #{forward.1} parent=1 // pred_region
      %s18 = ssub.s32 64, 64
      %19 = vsyncadd [#allocation3], %s18
      %s21 = sshll.u32 [#allocation2], 4
      %s22 = int_to_ptr.vmem [resolvable:$true] %s21
      %24 = dma.hbm_to_vmem [thread:$0]  %s0, 64, %s22, [#allocation3]
    $region5: #{forward.1} parent=1 // pred_fallthru
      _
    // Predicated region
    $region6: #{forward.1} parent=1 // pred_check
      _
    $region7: #{forward.1} parent=1 // pred_check_branch
      %26 = sbr.rel (0) target = $region9
    $region8: #{forward.1} parent=1 // pred_region
      %s28 = ssub.s32 64, 64
      %29 = vsyncadd [#allocation5], %s28
      %s31 = sshll.u32 [#allocation4], 4
      %s32 = int_to_ptr.vmem [resolvable:$true] %s31
      %34 = dma.hbm_to_vmem [thread:$0]  %s1, 64, %s32, [#allocation5]
    $region9: #{forward.1} parent=1 // pred_fallthru
      _
    // Predicated region
    $region10: #{forward.1} parent=1 // pred_check
      _
    $region11: #{forward.1} parent=1 // pred_check_branch
      %36 = sbr.rel (0) target = $region13
    $region12: #{forward.1} parent=1 // pred_region
      %s38 = ssub.s32 512, 512
      %39 = vsyncadd [#allocation5], %s38
      %s40 = sshll.u32 [#allocation6], 4
      %s41 = int_to_ptr.vmem [resolvable:$true] %s40
      %46 = dma.hbm_to_vmem [thread:$0]  %s2, 512, %s41, [#allocation5], 128, 128, 8
    $region13: #{forward.1} parent=1 // pred_fallthru
      _
    // Predicated region
    $region14: #{forward.1} parent=1 // pred_check
      _
    $region15: #{forward.1} parent=1 // pred_check_branch
      %48 = sbr.rel (0) target = $region17
    $region16: #{forward.1} parent=1 // pred_region
      %s50 = ssub.s32 256, 256
      %51 = vsyncadd [#allocation8], %s50
      %s52 = sshll.u32 [#allocation7], 4
      %s53 = int_to_ptr.vmem [resolvable:$true] %s52
      %58 = dma.hbm_to_vmem [thread:$0]  %s3, 256, %s53, [#allocation8], 128, 128, 8
    $region17: #{forward.1} parent=1 // pred_fallthru
      _
    // Predicated region
    $region18: #{forward.1} parent=1 // pred_check
      _
    $region19: #{forward.1} parent=1 // pred_check_branch
      %60 = sbr.rel (0) target = $region21
    $region20: #{forward.1} parent=1 // pred_region
      _
    $region21: #{forward.1} parent=1 // pred_fallthru
      _
    // Predicated region
    $region22: #{forward.1} parent=1 // pred_check
      _
    $region23: #{forward.1} parent=1 // pred_check_branch
      %62 = sbr.rel (0) target = $region25
    $region24: #{forward.1} parent=1 // pred_region
      %s64 = ssub.s32 768, 768
      %65 = vsyncadd [#allocation8], %s64
      %s66 = sshll.u32 [#allocation9], 4
      %s67 = int_to_ptr.vmem [resolvable:$true] %s66
      %72 = dma.hbm_to_vmem [thread:$0]  %s5, 768, %s67, [#allocation8], 256, 256, 16
    $region25: #{forward.1} parent=1 // pred_fallthru
      _
    // Predicated region
    $region26: #{forward.1} parent=1 // pred_check
      _
    $region27: #{forward.1} parent=1 // pred_check_branch
      %74 = sbr.rel (0) target = $region29
    $region28: #{forward.1} parent=1 // pred_region
      _
    $region29: #{forward.1} parent=1 // pred_fallthru
      _
    // Predicated region
    $region30: #{forward.1} parent=1 // pred_check
      _
    $region31: #{forward.1} parent=1 // pred_check_branch
      %76 = sbr.rel (0) target = $region33
    $region32: #{forward.1} parent=1 // pred_region
      %77 = dma.done [#allocation3], 64
    $region33: #{forward.1} parent=1 // pred_fallthru
      _
    // Predicated region
    $region34: #{forward.1} parent=1 // pred_check
      _
    $region35: #{forward.1} parent=1 // pred_check_branch
      %79 = sbr.rel (0) target = $region37
    $region36: #{forward.1} parent=1 // pred_region
      %80 = dma.done [#allocation5], 64
    $region37: #{forward.1} parent=1 // pred_fallthru
      _
    // Predicated region
    $region38: #{forward.1} parent=1 // pred_check
      _
    $region39: #{forward.1} parent=1 // pred_check_branch
      %82 = sbr.rel (0) target = $region41
    $region40: #{forward.1} parent=1 // pred_region
      %83 = dma.done [#allocation5], 512
    $region41: #{forward.1} parent=1 // pred_fallthru
      _
    // Predicated region
    $region42: #{forward.1} parent=1 // pred_check
      _
    $region43: #{forward.1} parent=1 // pred_check_branch
      %85 = sbr.rel (0) target = $region45
    $region44: #{forward.1} parent=1 // pred_region
      %86 = dma.done [#allocation8], 256
    $region45: #{forward.1} parent=1 // pred_fallthru
      _
    // Predicated region
    $region46: #{forward.1} parent=1 // pred_check
      _
    $region47: #{forward.1} parent=1 // pred_check_branch
      %88 = sbr.rel (0) target = $region49
    $region48: #{forward.1} parent=1 // pred_region
      %89 = dma.done [#allocation8], 768
    $region49: #{forward.1} parent=1 // pred_fallthru
      _
    %v90 = vld [vmem:[#allocation2] sm:$0xf]
    %v91 = vld [vmem:[#allocation6] sm:$0xff]
    %v92 = vld [vmem:[#allocation6 + $0x8] sm:$0xff]
    %v93 = vld [vmem:[#allocation6 + $0x10] sm:$0xff]
    %v94 = vld [vmem:[#allocation6 + $0x18] sm:$0xff]
    %v95 = vld [vmem:[#allocation4] sm:$0xf]
    %v96 = vld [vmem:[#allocation7] sm:$0xff]
    %v97 = vld [vmem:[#allocation7 + $0x8] sm:$0xff]
    %vm98 = vcmask 130048
    %v100 = vsel %vm98, %v95, 0
    %102 = vmatprep.subr.mxu0 0.0
    %103 = vmatpush1.msra.mxu0 %v96
    %104 = vmatprep.subr.mxu0 0.0
    %105 = vmatpush1.msra.mxu0 %v97
    %106 = vmatprep.subr.mxu0 0.0
    %107 = vmatpush1.msra.mxu0 0.0
    %108 = vmatprep.subr.mxu0 0.0
    %109 = vmatpush1.msra.mxu0 0.0
    %110 = vmatprep.subr.mxu0 0.0
    %111 = vmatpush1.msra.mxu0 0.0
    %112 = vmatprep.subr.mxu0 0.0
    %113 = vmatpush1.msra.mxu0 0.0
    %114 = vmatprep.subr.mxu0 0.0
    %115 = vmatpush1.msra.mxu0 0.0
    %116 = vmatprep.subr.mxu0 0.0
    %117 = vmatpush1.msra.mxu0 0.0
    %118 = vmatprep.subr.mxu0 0.0
    %119 = vmatpush1.msra.mxu0 0.0
    %120 = vmatprep.subr.mxu0 0.0
    %121 = vmatpush1.msra.mxu0 0.0
    %122 = vmatprep.subr.mxu0 0.0
    %123 = vmatpush1.msra.mxu0 0.0
    %124 = vmatprep.subr.mxu0 0.0
    %125 = vmatpush1.msra.mxu0 0.0
    %126 = vmatprep.subr.mxu0 0.0
    %127 = vmatpush1.msra.mxu0 0.0
    %128 = vmatprep.subr.mxu0 0.0
    %129 = vmatpush1.msra.mxu0 0.0
    %130 = vmatprep.subr.mxu0 0.0
    %131 = vmatpush1.msra.mxu0 0.0
    %132 = vmatprep.subr.mxu0 0.0
    %133 = vmatpush1.msra.mxu0 0.0
    %134 = vmatprep.subr.mxu0 0.0
    %135 = vmatpush1.msra.mxu0 0.0
    %136 = vmatprep.subr.mxu0 0.0
    %137 = vmatpush1.msra.mxu0 0.0
    %138 = vmatprep.subr.mxu0 0.0
    %139 = vmatpush1.msra.mxu0 0.0
    %140 = vmatprep.subr.mxu0 0.0
    %141 = vmatpush1.msra.mxu0 0.0
    %142 = vmatprep.subr.mxu0 0.0
    %143 = vmatpush1.msra.mxu0 0.0
    %144 = vmatprep.subr.mxu0 0.0
    %145 = vmatpush1.msra.mxu0 0.0
    %146 = vmatprep.subr.mxu0 0.0
    %147 = vmatpush1.msra.mxu0 0.0
    %148 = vmatprep.subr.mxu0 0.0
    %149 = vmatpush1.msra.mxu0 0.0
    %150 = vmatprep.subr.mxu0 0.0
    %151 = vmatpush1.msra.mxu0 0.0
    %152 = vmatprep.subr.mxu0 0.0
    %153 = vmatpush1.msra.mxu0 0.0
    %154 = vmatprep.subr.mxu0 0.0
    %155 = vmatpush1.msra.mxu0 0.0
    %156 = vmatprep.subr.mxu0 0.0
    %157 = vmatpush1.msra.mxu0 0.0
    %158 = vmatprep.subr.mxu0 0.0
    %159 = vmatpush1.msra.mxu0 0.0
    %160 = vmatprep.subr.mxu0 0.0
    %161 = vmatpush1.msra.mxu0 0.0
    %162 = vmatprep.subr.mxu0 0.0
    %163 = vmatpush1.msra.mxu0 0.0
    %164 = vmatprep.subr.mxu0 0.0
    %165 = vmatpush1.msra.mxu0 0.0
    %166 = vmatprep.mubr.f32.mxu0 0.0
    %167 = vmatmul.mubr.f32.gmra.mrb[0].mxu0 %v100
    %v168 = vpop.f32.mrb[0].mxu0
    %v169 = vadd.f32 0.0, %v168
    %v170 = vpop.f32.mrb[0].mxu0
    %171 = vdwg.mxu0
    %vm172 = vcmask 261120
    %v174 = vsel %vm172, %v90, 0
    %176 = vmatprep.subr.mxu0 0.0
    %177 = vmatpush1.msra.mxu0 %v91
    %178 = vmatprep.subr.mxu0 0.0
    %179 = vmatpush1.msra.mxu0 %v92
    %180 = vmatprep.subr.mxu0 0.0
    %181 = vmatpush1.msra.mxu0 %v93
    %182 = vmatprep.subr.mxu0 0.0
    %183 = vmatpush1.msra.mxu0 %v94
    %184 = vmatprep.subr.mxu0 0.0
    %185 = vmatpush1.msra.mxu0 0.0
    %186 = vmatprep.subr.mxu0 0.0
    %187 = vmatpush1.msra.mxu0 0.0
    %188 = vmatprep.subr.mxu0 0.0
    %189 = vmatpush1.msra.mxu0 0.0
    %190 = vmatprep.subr.mxu0 0.0
    %191 = vmatpush1.msra.mxu0 0.0
    %192 = vmatprep.subr.mxu0 0.0
    %193 = vmatpush1.msra.mxu0 0.0
    %194 = vmatprep.subr.mxu0 0.0
    %195 = vmatpush1.msra.mxu0 0.0
    %196 = vmatprep.subr.mxu0 0.0
    %197 = vmatpush1.msra.mxu0 0.0
    %198 = vmatprep.subr.mxu0 0.0
    %199 = vmatpush1.msra.mxu0 0.0
    %200 = vmatprep.subr.mxu0 0.0
    %201 = vmatpush1.msra.mxu0 0.0
    %202 = vmatprep.subr.mxu0 0.0
    %203 = vmatpush1.msra.mxu0 0.0
    %204 = vmatprep.subr.mxu0 0.0
    %205 = vmatpush1.msra.mxu0 0.0
    %206 = vmatprep.subr.mxu0 0.0
    %207 = vmatpush1.msra.mxu0 0.0
    %208 = vmatprep.subr.mxu0 0.0
    %209 = vmatpush1.msra.mxu0 0.0
    %210 = vmatprep.subr.mxu0 0.0
    %211 = vmatpush1.msra.mxu0 0.0
    %212 = vmatprep.subr.mxu0 0.0
    %213 = vmatpush1.msra.mxu0 0.0
    %214 = vmatprep.subr.mxu0 0.0
    %215 = vmatpush1.msra.mxu0 0.0
    %216 = vmatprep.subr.mxu0 0.0
    %217 = vmatpush1.msra.mxu0 0.0
    %218 = vmatprep.subr.mxu0 0.0
    %219 = vmatpush1.msra.mxu0 0.0
    %220 = vmatprep.subr.mxu0 0.0
    %221 = vmatpush1.msra.mxu0 0.0
    %222 = vmatprep.subr.mxu0 0.0
    %223 = vmatpush1.msra.mxu0 0.0
    %224 = vmatprep.subr.mxu0 0.0
    %225 = vmatpush1.msra.mxu0 0.0
    %226 = vmatprep.subr.mxu0 0.0
    %227 = vmatpush1.msra.mxu0 0.0
    %228 = vmatprep.subr.mxu0 0.0
    %229 = vmatpush1.msra.mxu0 0.0
    %230 = vmatprep.subr.mxu0 0.0
    %231 = vmatpush1.msra.mxu0 0.0
    %232 = vmatprep.subr.mxu0 0.0
    %233 = vmatpush1.msra.mxu0 0.0
    %234 = vmatprep.subr.mxu0 0.0
    %235 = vmatpush1.msra.mxu0 0.0
    %236 = vmatprep.subr.mxu0 0.0
    %237 = vmatpush1.msra.mxu0 0.0
    %238 = vmatprep.subr.mxu0 0.0
    %239 = vmatpush1.msra.mxu0 0.0
    %240 = vmatprep.mubr.f32.mxu0 0.0
    %241 = vmatmul.mubr.f32.gmra.mrb[0].mxu0 %v174
    %v242 = vpop.f32.mrb[0].mxu0
    %v243 = vadd.f32 %v169, %v242
    %v244 = vpop.f32.mrb[0].mxu0
    %245 = vdwg.mxu0
    %v246 = vld [vmem:[%s4] sm:$0x1]
    %v248 = vlaneseq
    %v249 = vshrl.u32 %v248, 7
    %v250 = vsub.s32 0, %v249
    %v251 = vrot.slane %v246, %v250
    %v253 = vadd.f32 %v243, %v251
    %vm254 = vcmp.gt.f32.partialorder %v253, 0.0
    %v255 = vmul.f32 %v253, 0.01
    %v256 = vsel %vm254, %v253, %v255
    %v257 = vld [vmem:[#allocation9] sm:$0xff]
    %v258 = vld [vmem:[#allocation9 + $0x8] sm:$0xff]
    %v259 = vld [vmem:[#allocation9 + $0x10] sm:$0xff]
    %v260 = vld [vmem:[#allocation9 + $0x18] sm:$0xff]
    %v261 = vld [vmem:[#allocation9 + $0x20] sm:$0xff]
    %v262 = vld [vmem:[#allocation9 + $0x28] sm:$0xff]
    %v263 = vld [vmem:[%s6] sm:$0x3]
    %v265 = vlaneseq
    %v266 = vshrl.u32 %v265, 7
    %v267 = vsub.s32 0, %v266
    %v268 = vrot.slane %v263, %v267
    %v269 = vlaneseq
    %v270 = vshrl.u32 %v269, 7
    %v271 = vsub.s32 1, %v270
    %v272 = vrot.slane %v263, %v271
    %vm275 = vcmask 195584
    %v277 = vsel %vm275, %v256, 0
    %279 = vmatprep.subr.mxu0 %v258
    %280 = vmatpush1.msra.mxu0 %v257
    %281 = vmatprep.subr.mxu0 %v260
    %282 = vmatpush1.msra.mxu0 %v259
    %283 = vmatprep.subr.mxu0 %v262
    %284 = vmatpush1.msra.mxu0 %v261
    %285 = vmatprep.subr.mxu0 0.0
    %286 = vmatpush1.msra.mxu0 0.0
    %287 = vmatprep.subr.mxu0 0.0
    %288 = vmatpush1.msra.mxu0 0.0
    %289 = vmatprep.subr.mxu0 0.0
    %290 = vmatpush1.msra.mxu0 0.0
    %291 = vmatprep.subr.mxu0 0.0
    %292 = vmatpush1.msra.mxu0 0.0
    %293 = vmatprep.subr.mxu0 0.0
    %294 = vmatpush1.msra.mxu0 0.0
    %295 = vmatprep.subr.mxu0 0.0
    %296 = vmatpush1.msra.mxu0 0.0
    %297 = vmatprep.subr.mxu0 0.0
    %298 = vmatpush1.msra.mxu0 0.0
    %299 = vmatprep.subr.mxu0 0.0
    %300 = vmatpush1.msra.mxu0 0.0
    %301 = vmatprep.subr.mxu0 0.0
    %302 = vmatpush1.msra.mxu0 0.0
    %303 = vmatprep.subr.mxu0 0.0
    %304 = vmatpush1.msra.mxu0 0.0
    %305 = vmatprep.subr.mxu0 0.0
    %306 = vmatpush1.msra.mxu0 0.0
    %307 = vmatprep.subr.mxu0 0.0
    %308 = vmatpush1.msra.mxu0 0.0
    %309 = vmatprep.subr.mxu0 0.0
    %310 = vmatpush1.msra.mxu0 0.0
    %311 = vmatprep.subr.mxu0 0.0
    %312 = vmatpush1.msra.mxu0 0.0
    %313 = vmatprep.subr.mxu0 0.0
    %314 = vmatpush1.msra.mxu0 0.0
    %315 = vmatprep.subr.mxu0 0.0
    %316 = vmatpush1.msra.mxu0 0.0
    %317 = vmatprep.subr.mxu0 0.0
    %318 = vmatpush1.msra.mxu0 0.0
    %319 = vmatprep.subr.mxu0 0.0
    %320 = vmatpush1.msra.mxu0 0.0
    %321 = vmatprep.subr.mxu0 0.0
    %322 = vmatpush1.msra.mxu0 0.0
    %323 = vmatprep.subr.mxu0 0.0
    %324 = vmatpush1.msra.mxu0 0.0
    %325 = vmatprep.subr.mxu0 0.0
    %326 = vmatpush1.msra.mxu0 0.0
    %327 = vmatprep.subr.mxu0 0.0
    %328 = vmatpush1.msra.mxu0 0.0
    %329 = vmatprep.subr.mxu0 0.0
    %330 = vmatpush1.msra.mxu0 0.0
    %331 = vmatprep.subr.mxu0 0.0
    %332 = vmatpush1.msra.mxu0 0.0
    %333 = vmatprep.subr.mxu0 0.0
    %334 = vmatpush1.msra.mxu0 0.0
    %335 = vmatprep.subr.mxu0 0.0
    %336 = vmatpush1.msra.mxu0 0.0
    %337 = vmatprep.subr.mxu0 0.0
    %338 = vmatpush1.msra.mxu0 0.0
    %339 = vmatprep.subr.mxu0 0.0
    %340 = vmatpush1.msra.mxu0 0.0
    %341 = vmatprep.subr.mxu0 0.0
    %342 = vmatpush1.msra.mxu0 0.0
    %343 = vmatprep.mubr.f32.mxu0 0.0
    %344 = vmatmul.mubr.f32.gmra.mrb[0].mxu0 %v277
    %v345 = vpop.f32.mrb[0].mxu0
    %v346 = vadd.f32 %v268, %v345
    %v347 = vpop.f32.mrb[0].mxu0
    %v348 = vadd.f32 %v272, %v347
    %349 = vdwg.mxu0
    %v352 = vcombine.low %v346, %v348
    %354 = vst [vmem:[%s7] sm:$0xff] %v352
    // Predicated region
    $region50: #{forward.1} parent=1 // pred_check
      _
    $region51: #{forward.1} parent=1 // pred_check_branch
      %356 = sbr.rel (0) target = $region53
    $region52: #{forward.1} parent=1 // pred_region
      _
    $region53: #{forward.1} parent=1 // pred_fallthru
      _
    // Predicated region
    $region54: #{forward.1} parent=1 // pred_check
      _
    $region55: #{forward.1} parent=1 // pred_check_branch
      %358 = sbr.rel (0) target = $region57
    $region56: #{forward.1} parent=1 // pred_region
      _
    $region57: #{forward.1} parent=1 // pred_fallthru
      _
    %359 = vsyncpa [#allocation3], 1
    %360 = vsyncpa [#allocation5], 1
    %361 = vsyncpa [#allocation8], 1

</llo_original>
